<compile_context>
chip_gen: v5e
topology: v5e:2x2
jax: 0.10.0
libtpu: 0.0.40
codegen_flags: <defaults>
</compile_context>

<pallas_src>
import functools

import jax
import jax.numpy as jnp
from jax.experimental import pallas as pl
from jax.experimental.pallas import tpu as pltpu


def _space_to_depth_kernel(x_ref, o_ref, *, compute_dtype):
    # x_ref: (1, BR, 2*W)    BR merged (channel, out-row) rows; lanes hold
    #                        [input row 2i | input row 2i+1] for out-row i.
    # o_ref: (1, 4, BR, Wh)  quadrant-major output block (torch.cat order).
    w2 = x_ref.shape[-1]
    w = w2 // 2
    wh = w // 2

    xm = x_ref[0]                                 # (BR, 2W) contiguous, lane-dense
    h_even = xm[:, :w].astype(compute_dtype)      # input rows 2i     (even H)
    h_odd = xm[:, w:].astype(compute_dtype)       # input rows 2i + 1 (odd H)

    # 0/1 selection matrix built in-register each step (cheap VPU work that
    # hides under the DMA in this memory-bound kernel; no HBM input, no
    # double-buffered VMEM copy).  Column k < Wh picks even W column 2k,
    # column k >= Wh picks odd W column 2(k-Wh)+1.
    row = jax.lax.broadcasted_iota(jnp.int32, (w, w), 0)
    col = jax.lax.broadcasted_iota(jnp.int32, (w, w), 1)
    src = jnp.where(col < wh, 2 * col, 2 * (col - wh) + 1)
    sel = jnp.where(row == src, 1.0, 0.0).astype(compute_dtype)   # (W, 2*Wh)

    # W de-interleave on the (otherwise idle) MXU.
    y_even = jnp.dot(h_even, sel, preferred_element_type=jnp.float32)  # (BR, 2Wh)
    y_odd = jnp.dot(h_odd, sel, preferred_element_type=jnp.float32)

    dt = o_ref.dtype
    o_ref[0, 0, :, :] = y_even[:, :wh].astype(dt)   # x[..., ::2,  ::2]
    o_ref[0, 1, :, :] = y_odd[:, :wh].astype(dt)    # x[..., 1::2, ::2]
    o_ref[0, 2, :, :] = y_even[:, wh:].astype(dt)   # x[..., ::2,  1::2]
    o_ref[0, 3, :, :] = y_odd[:, wh:].astype(dt)    # x[..., 1::2, 1::2]


def _round_up(a, m):
    return -(-a // m) * m


def _sublane_multiple(dtype):
    """Sublane tile for the dtype: 8 (4B), 16 (2B), 32 (1B)."""
    return max(8, 32 // jnp.dtype(dtype).itemsize)


def _pick_block_rows(rows, w, itemsize, sub, budget_bytes):
    """Rows per block so one (input + output) buffer is ~budget_bytes."""
    per_row = 4 * w * itemsize            # 2W in + 4*Wh out elements per row
    cap = max(sub, budget_bytes // max(per_row, 1))
    cap = (cap // sub) * sub
    if cap >= rows:
        return rows                       # full extent: always legal
    return cap


def space_to_depth(x, *, block_rows=None, block_budget_bytes=8 << 20):
    """space_to_depth forward. x: (N, C, H, W) -> (N, 4C, H//2, W//2)."""
    n, c, h, w = x.shape
    if h % 2 or w % 2:
        raise ValueError("space_to_depth requires even H and W")
    hh, wh = h // 2, w // 2
    rows = c * hh                                   # merged (channel, out-row) axis
    item = jnp.dtype(x.dtype).itemsize
    sub = _sublane_multiple(x.dtype)

    # MXU selection matmul dtype: exact for f32/bf16 inputs directly; other
    # dtypes (fp16, ints) go through f32 (exact for fp16 and |int| < 2^24).
    if x.dtype == jnp.float32 or x.dtype == jnp.bfloat16:
        compute_dtype = x.dtype
    else:
        compute_dtype = jnp.float32

    if block_rows is None:
        block_rows = _pick_block_rows(rows, w, item, sub, block_budget_bytes)
    else:
        block_rows = max(sub, _round_up(block_rows, sub))
        if block_rows >= rows:
            block_rows = rows

    # Keep both v7x TensorCores busy when there is only one sample.
    if n == 1 and block_rows == rows and rows > sub:
        half = _round_up((rows + 1) // 2, sub)
        if half < rows:
            block_rows = half

    num_row_blocks = -(-rows // block_rows)         # cdiv; partial last block OK
    grid = (n, num_row_blocks)

    # Free, contiguous view: each row packs input rows (2i, 2i+1) of a channel.
    xv = x.reshape(n, rows, 2 * w)

    # VMEM budget: double-buffered input + output blocks, in-kernel selection
    # matrix, matmul/cast temporaries, plus margin.  Stay under v7x's 64 MiB.
    cdt_item = jnp.dtype(compute_dtype).itemsize
    in_blk = block_rows * 2 * w * item
    out_blk = 4 * block_rows * wh * item
    sel_bytes = 2 * w * wh * cdt_item
    interm = 4 * block_rows * w * 4 + 2 * block_rows * w * cdt_item
    vmem_limit = int(2 * (in_blk + out_blk) + sel_bytes + interm + (4 << 20))
    vmem_limit = max(vmem_limit, 16 << 20)
    vmem_limit = min(vmem_limit, 56 << 20)

    cost = pl.CostEstimate(
        flops=int(2 * n * rows * w * 2 * wh),       # selection matmuls
        transcendentals=0,
        bytes_accessed=int(2 * x.size * item))      # one read + one write

    out4 = pl.pallas_call(
        functools.partial(_space_to_depth_kernel, compute_dtype=compute_dtype),
        out_shape=jax.ShapeDtypeStruct((n, 4, rows, wh), x.dtype),
        grid=grid,
        in_specs=[
            pl.BlockSpec((1, block_rows, 2 * w), lambda i, r: (i, r, 0)),
        ],
        out_specs=pl.BlockSpec((1, 4, block_rows, wh),
                               lambda i, r: (i, 0, r, 0)),
        compiler_params=pltpu.CompilerParams(
            dimension_semantics=("parallel", "parallel"),
            vmem_limit_bytes=vmem_limit),
        cost_estimate=cost,
    )(xv)

    # Free reshape: (N, 4, C*Hh, Wh) -> (N, 4C, Hh, Wh), matching torch.cat
    # channel order [q0: c0..C-1, q1: c0..C-1, q2: ..., q3: ...].
    return out4.reshape(n, 4 * c, hh, wh)


if __name__ == "__main__":
    N, C, H, W = 2, 4, 16, 16
    key = jax.random.PRNGKey(0)
    x = jax.random.normal(key, (N, C, H, W), jnp.float32)

    # block_rows=8 exercises real multi-step tiling even at this toy size
    # (grid = (2, 4)); the default auto-picker chooses ~8 MiB blocks for
    # realistic shapes.
    out = space_to_depth(x, block_rows=8)
    out = jax.block_until_ready(out)

    ref = jnp.concatenate(
        [x[:, :, ::2, ::2], x[:, :, 1::2, ::2],
         x[:, :, ::2, 1::2], x[:, :, 1::2, 1::2]], axis=1)

    assert out.shape == (N, 4 * C, H // 2, W // 2), out.shape
    max_err = float(jnp.max(jnp.abs(out - ref)))
    assert jnp.allclose(out, ref, atol=1e-4, rtol=1e-4), max_err
    print("KERNEL_OK")
</pallas_src>

<mosaic_0001>
module attributes {stable_mosaic.version = 11 : i64} {
  func.func @_space_to_depth_kernel(%arg0: i32, %arg1: i32, %arg2: memref<1x8x32xf32, #tpu.memory_space<vmem>>, %arg3: memref<1x4x8x8xf32, #tpu.memory_space<vmem>>) attributes {dimension_semantics = [#tpu.dimension_semantics<parallel>, #tpu.dimension_semantics<parallel>], iteration_bounds = array<i64: 2, 4>, scalar_prefetch = 0 : i64, scratch_operands = 0 : i64, tpu.core_type = #tpu.core_type<tc>, window_params = [{transform_indices = @transform_0, window_bounds = array<i64: 1, 8, 32>}, {transform_indices = @transform_1, window_bounds = array<i64: 1, 4, 8, 8>}]} {
    %c0 = arith.constant 0 : index
    %c0_0 = arith.constant 0 : index
    %c0_1 = arith.constant 0 : index
    %0 = vector.load %arg2[%c0, %c0_0, %c0_1] : memref<1x8x32xf32, #tpu.memory_space<vmem>>, vector<1x8x32xf32>
    %1 = vector.shape_cast %0 : vector<1x8x32xf32> to vector<8x32xf32>
    %2 = vector.extract_strided_slice %1 {offsets = [0, 0], sizes = [8, 16], strides = [1, 1]} : vector<8x32xf32> to vector<8x16xf32>
    %3 = vector.extract_strided_slice %1 {offsets = [0, 16], sizes = [8, 16], strides = [1, 1]} : vector<8x32xf32> to vector<8x16xf32>
    %4 = tpu.iota {dimensions = array<i32: 0>} : vector<16x16xi32>
    %5 = tpu.iota {dimensions = array<i32: 1>} : vector<16x16xi32>
    %c8_i32 = arith.constant 8 : i32
    %6 = vector.broadcast %c8_i32 : i32 to vector<16x16xi32>
    %7 = arith.cmpi slt, %5, %6 : vector<16x16xi32>
    %c2_i32 = arith.constant 2 : i32
    %8 = vector.broadcast %c2_i32 : i32 to vector<16x16xi32>
    %9 = arith.muli %8, %5 : vector<16x16xi32>
    %c8_i32_2 = arith.constant 8 : i32
    %10 = vector.broadcast %c8_i32_2 : i32 to vector<16x16xi32>
    %11 = arith.subi %5, %10 : vector<16x16xi32>
    %c2_i32_3 = arith.constant 2 : i32
    %12 = vector.broadcast %c2_i32_3 : i32 to vector<16x16xi32>
    %13 = arith.muli %12, %11 : vector<16x16xi32>
    %c1_i32 = arith.constant 1 : i32
    %14 = vector.broadcast %c1_i32 : i32 to vector<16x16xi32>
    %15 = arith.addi %13, %14 : vector<16x16xi32>
    %16 = arith.select %7, %9, %15 : vector<16x16xi1>, vector<16x16xi32>
    %17 = arith.cmpi eq, %4, %16 : vector<16x16xi32>
    %cst = arith.constant 1.000000e+00 : f32
    %cst_4 = arith.constant 0.000000e+00 : f32
    %18 = vector.broadcast %cst : f32 to vector<16x16xf32>
    %19 = vector.broadcast %cst_4 : f32 to vector<16x16xf32>
    %20 = arith.select %17, %18, %19 : vector<16x16xi1>, vector<16x16xf32>
    %cst_5 = arith.constant dense<0.000000e+00> : vector<8x16xf32>
    %21 = tpu.matmul %2, %20, %cst_5 {dimension_numbers = #tpu.dot_dimension_numbers<[1], [0], [0], [1], [0, 0, 1, 1], [], []>} : vector<8x16xf32>, vector<16x16xf32>, vector<8x16xf32> -> vector<8x16xf32>
    %cst_6 = arith.constant dense<0.000000e+00> : vector<8x16xf32>
    %22 = tpu.matmul %3, %20, %cst_6 {dimension_numbers = #tpu.dot_dimension_numbers<[1], [0], [0], [1], [0, 0, 1, 1], [], []>} : vector<8x16xf32>, vector<16x16xf32>, vector<8x16xf32> -> vector<8x16xf32>
    %23 = vector.extract_strided_slice %21 {offsets = [0, 0], sizes = [8, 8], strides = [1, 1]} : vector<8x16xf32> to vector<8x8xf32>
    %c0_7 = arith.constant 0 : index
    %c0_8 = arith.constant 0 : index
    %c0_9 = arith.constant 0 : index
    %c0_10 = arith.constant 0 : index
    %24 = vector.load %arg3[%c0_7, %c0_8, %c0_9, %c0_10] : memref<1x4x8x8xf32, #tpu.memory_space<vmem>>, vector<1x1x8x8xf32>
    %25 = vector.shape_cast %24 : vector<1x1x8x8xf32> to vector<8x8xf32>
    %26 = vector.shape_cast %23 : vector<8x8xf32> to vector<1x1x8x8xf32>
    tpu.vector_store %arg3[%c0_7, %c0_8, %c0_9, %c0_10], %26 {strides = array<i32>} : memref<1x4x8x8xf32, #tpu.memory_space<vmem>>, vector<1x1x8x8xf32>,
    %27 = vector.extract_strided_slice %22 {offsets = [0, 0], sizes = [8, 8], strides = [1, 1]} : vector<8x16xf32> to vector<8x8xf32>
    %c0_11 = arith.constant 0 : index
    %c1 = arith.constant 1 : index
    %c0_12 = arith.constant 0 : index
    %c0_13 = arith.constant 0 : index
    %28 = vector.load %arg3[%c0_11, %c1, %c0_12, %c0_13] : memref<1x4x8x8xf32, #tpu.memory_space<vmem>>, vector<1x1x8x8xf32>
    %29 = vector.shape_cast %28 : vector<1x1x8x8xf32> to vector<8x8xf32>
    %30 = vector.shape_cast %27 : vector<8x8xf32> to vector<1x1x8x8xf32>
    tpu.vector_store %arg3[%c0_11, %c1, %c0_12, %c0_13], %30 {strides = array<i32>} : memref<1x4x8x8xf32, #tpu.memory_space<vmem>>, vector<1x1x8x8xf32>,
    %31 = vector.extract_strided_slice %21 {offsets = [0, 8], sizes = [8, 8], strides = [1, 1]} : vector<8x16xf32> to vector<8x8xf32>
    %c0_14 = arith.constant 0 : index
    %c2 = arith.constant 2 : index
    %c0_15 = arith.constant 0 : index
    %c0_16 = arith.constant 0 : index
    %32 = vector.load %arg3[%c0_14, %c2, %c0_15, %c0_16] : memref<1x4x8x8xf32, #tpu.memory_space<vmem>>, vector<1x1x8x8xf32>
    %33 = vector.shape_cast %32 : vector<1x1x8x8xf32> to vector<8x8xf32>
    %34 = vector.shape_cast %31 : vector<8x8xf32> to vector<1x1x8x8xf32>
    tpu.vector_store %arg3[%c0_14, %c2, %c0_15, %c0_16], %34 {strides = array<i32>} : memref<1x4x8x8xf32, #tpu.memory_space<vmem>>, vector<1x1x8x8xf32>,
    %35 = vector.extract_strided_slice %22 {offsets = [0, 8], sizes = [8, 8], strides = [1, 1]} : vector<8x16xf32> to vector<8x8xf32>
    %c0_17 = arith.constant 0 : index
    %c3 = arith.constant 3 : index
    %c0_18 = arith.constant 0 : index
    %c0_19 = arith.constant 0 : index
    %36 = vector.load %arg3[%c0_17, %c3, %c0_18, %c0_19] : memref<1x4x8x8xf32, #tpu.memory_space<vmem>>, vector<1x1x8x8xf32>
    %37 = vector.shape_cast %36 : vector<1x1x8x8xf32> to vector<8x8xf32>
    %38 = vector.shape_cast %35 : vector<8x8xf32> to vector<1x1x8x8xf32>
    tpu.vector_store %arg3[%c0_17, %c3, %c0_18, %c0_19], %38 {strides = array<i32>} : memref<1x4x8x8xf32, #tpu.memory_space<vmem>>, vector<1x1x8x8xf32>,
    return
  }
  func.func @transform_0(%arg0: i32, %arg1: i32) -> (i32, i32, i32) {
    %c0_i32 = arith.constant 0 : i32
    %c0_i32_0 = arith.constant 0 : i32
    return %arg0, %arg1, %c0_i32 : i32, i32, i32
  }
  func.func @transform_1(%arg0: i32, %arg1: i32) -> (i32, i32, i32, i32) {
    %c0_i32 = arith.constant 0 : i32
    %c0_i32_0 = arith.constant 0 : i32
    %c0_i32_1 = arith.constant 0 : i32
    return %arg0, %c0_i32, %arg1, %c0_i32_0 : i32, i32, i32, i32
  }
}

</mosaic_0001>

<llo_original>
// kernel: tpu_custom_call.1
$region0: #{tpu_custom_call.1}
  #allocation0 [shape = 'u32[]', space=smem, size = 0x4, offset = 0x4, fixed_abs, tag = 'smem constant byte address 0x4 - core index']
  #allocation1 [shape = 'u32[72,128]{1,0:T(1,128)}', space=vmem, size = 0x9000, scoped, tag = 'internal scratch']
  %s0 = inlined_call_operand.hbm [shape: f32[2,32,32], index: 0, kind: input, shape index: {}]
  %s1 = inlined_call_operand.vmem [shape: f32[2,4,32,8], index: 1, kind: output, shape index: {}]
  %s2 = sld [smem:[#allocation0]]
  $region75: #{tpu_custom_call.1} parent=0
    _
  %s4 = ssub.s32 1, %s2
  %s5 = scalar_select 0, %s4, %s2
  $region1: #{tpu_custom_call.1} parent=0
    #allocation2 [shape = 'u8[8192]{0}', space=vmem, size = 0x2000, scoped, tag = 'input window, operand 0']
    #allocation3 [shape = 's32[2]{0}', space=sflag, size = 0x8, scoped, tag = 'scoped memory for tpu_custom_call.1']
    #allocation4 [shape = 'u8[32768]{0}', space=vmem, size = 0x8000, scoped, tag = 'output window, operand 0']
    %6 = vsyncpa [#allocation3], 0
    %s7 = scalar_lea.sflag [#allocation3], 1
    %8 = vsyncpa %s7, 0
    loop: start=0, step=1, limit=10
    $region2: #{tpu_custom_call.1} parent=1 // loop_pre_header
      _
    $region3: #{tpu_custom_call.1} parent=1 // loop_header
      %s10 = sphi 0, %s14
      %p11 = scmp.ge.s32.totalorder %s10, 10
      %s17 = sphi 0, %s29
      %s18 = sphi 0, %s25
      %s19 = sphi 0, %s17
      %s20 = sphi 0, %s18
      %s21 = sphi 0, %s19
      %s22 = sphi 0, %s20
      %s34 = sphi 0, %s36
      %s37 = sphi 0, %s34
      %s38 = sphi 0, %s37
      %s54 = sphi 0, %s38
      %s62 = sphi 0, %s64
      %s65 = sphi 0, %s62
      %s66 = sphi 0, %s65
      %s82 = sphi 0, %s66
    $region4: #{tpu_custom_call.1} parent=1 // loop_header_branch
      %13 = sbr.rel (%p11) target = $region8
    $region5: #{tpu_custom_call.1} parent=1 // loop_body
      %s15 = ssub.s32 %s10, 1
      %s16 = ssub.s32 %s10, 2
      %s23 = sadd.s32 1, %s18
      %p24 = scmp.ge.s32.totalorder %s23, 4
      %s25 = scalar_select %p24, 0, %s23
      %s26 = sadd.s32 1, %s17
      %s27 = scalar_select %p24, %s26, %s17
      %p28 = scmp.ge.s32.totalorder %s27, 2
      %s29 = scalar_select %p28, 0, %s27
      %s30 = ssub.s32 %s17, %s29
      %s31 = ssub.s32 %s18, %s25
      %s32 = sor.u32 %s30, %s31
      %p33 = scmp.eq.s32.totalorder %s32, 0
      %s35 = sadd.s32 %s34, 1
      %s36 = scalar_select %p33, %s34, %s35
      %p39 = pneg %p33
      %p40 = scmp.eq.s32.totalorder %s10, 7
      %p41 = por %p39, %p40
      %p42 = scmp.ne.s32.totalorder %s34, %s37
      %p43 = scmp.eq.s32.totalorder %s10, 0
      %p44 = por %p42, %p43
      %p45 = scmp.ne.s32.totalorder %s34, %s37
      %p46 = scmp.eq.s32.totalorder %s15, 7
      %p47 = por %p45, %p46
      %p48 = scmp.ne.s32.totalorder %s37, %s38
      %p49 = scmp.eq.s32.totalorder %s15, 0
      %p50 = por %p48, %p49
      %p51 = scmp.ne.s32.totalorder %s37, %s38
      %p52 = scmp.eq.s32.totalorder %s16, 7
      %p53 = por %p51, %p52
      %p55 = scmp.ne.s32.totalorder %s38, %s54
      %p56 = scmp.eq.s32.totalorder %s16, 0
      %p57 = por %p55, %p56
      %s58 = ssub.s32 %s17, %s29
      %s59 = ssub.s32 %s18, %s25
      %s60 = sor.u32 %s58, %s59
      %p61 = scmp.eq.s32.totalorder %s60, 0
      %s63 = sadd.s32 %s62, 1
      %s64 = scalar_select %p61, %s62, %s63
      %p67 = pneg %p61
      %p68 = scmp.eq.s32.totalorder %s10, 7
      %p69 = por %p67, %p68
      %p70 = scmp.ne.s32.totalorder %s62, %s65
      %p71 = scmp.eq.s32.totalorder %s10, 0
      %p72 = por %p70, %p71
      %p73 = scmp.ne.s32.totalorder %s62, %s65
      %p74 = scmp.eq.s32.totalorder %s15, 7
      %p75 = por %p73, %p74
      %p76 = scmp.ne.s32.totalorder %s65, %s66
      %p77 = scmp.eq.s32.totalorder %s15, 0
      %p78 = por %p76, %p77
      %p79 = scmp.ne.s32.totalorder %s65, %s66
      %p80 = scmp.eq.s32.totalorder %s16, 7
      %p81 = por %p79, %p80
      %p83 = scmp.ne.s32.totalorder %s66, %s82
      %p84 = scmp.eq.s32.totalorder %s16, 0
      %p85 = por %p83, %p84
      %p86 = scmp.le.s32.totalorder 1, %s10
      %p87 = scmp.lt.s32.totalorder %s10, 9
      %p88 = pnand %p86, %p87
      %p89 = pneg %p88
      // Predicated region
      $region9: #{tpu_custom_call.1} parent=5 // pred_check
        _
      $region10: #{tpu_custom_call.1} parent=5 // pred_check_branch
        %91 = sbr.rel (%p88) target = $region12
      $region11: #{tpu_custom_call.1} parent=5 // pred_region
        %s92 = ssub.s32 %s10, 1
      $region12: #{tpu_custom_call.1} parent=5 // pred_fallthru
        _
      %p93 = scmp.lt.s32.totalorder %s10, 8
      // Predicated region
      $region13: #{tpu_custom_call.1} parent=5 // pred_check
        %p94 = pneg %p93
      $region14: #{tpu_custom_call.1} parent=5 // pred_check_branch
        %96 = sbr.rel (%p94) target = $region16
      $region15: #{tpu_custom_call.1} parent=5 // pred_region
        // Predicated region
        $region17: #{tpu_custom_call.1} parent=15 // pred_check
          %p97 = pneg %p44
        $region18: #{tpu_custom_call.1} parent=15 // pred_check_branch
          %99 = sbr.rel (%p97) target = $region20
        $region19: #{tpu_custom_call.1} parent=15 // pred_region
          %s100 = sand.u32 %s34, 1
          %s101 = scalar_lea.sflag [#allocation3], %s100
          %s102 = sand.u32 %s34, 1
          %s103 = smul.addr %s102, 8
          %s104 = scalar_lea.vmem [#allocation2], %s103
          %106 = vsyncadd %s101, 0
          %s107 = smul.addr %s17, 4
          %s108 = sadd.s32 %s18, %s107
          %s109 = smul.addr %s108, 8
          %s110 = scalar_lea.hbm %s0, %s109
          %s112 = sshll.u32 %s110, 4
          %s113 = int_to_ptr.hbm [resolvable:$true] %s112
          %s114 = sshll.u32 %s104, 4
          %s115 = int_to_ptr.vmem [resolvable:$true] %s114
          %117 = dma.hbm_to_vmem [thread:$0]  %s113, 128, %s115, %s101
        $region20: #{tpu_custom_call.1} parent=15 // pred_fallthru
          _
      $region16: #{tpu_custom_call.1} parent=5 // pred_fallthru
        _
      %p118 = scmp.le.s32.totalorder 1, %s10
      %p119 = scmp.lt.s32.totalorder %s10, 9
      %p120 = pnand %p118, %p119
      %p121 = pneg %p120
      // Predicated region
      $region21: #{tpu_custom_call.1} parent=5 // pred_check
        _
      $region22: #{tpu_custom_call.1} parent=5 // pred_check_branch
        %123 = sbr.rel (%p120) target = $region24
      $region23: #{tpu_custom_call.1} parent=5 // pred_region
        %s124 = ssub.s32 %s10, 1
        %s125 = sand.u32 %s37, 1
        %s126 = scalar_lea.sflag [#allocation3], %s125
        %s127 = sand.u32 %s37, 1
        %s128 = smul.addr %s127, 8
        %s129 = scalar_lea.vmem [#allocation2], %s128
        // Predicated region
        $region25: #{tpu_custom_call.1} parent=23 // pred_check
          %p130 = pneg %p50
        $region26: #{tpu_custom_call.1} parent=23 // pred_check_branch
          %132 = sbr.rel (%p130) target = $region28
        $region27: #{tpu_custom_call.1} parent=23 // pred_region
          %134 = dma.done %s126, 128
        $region28: #{tpu_custom_call.1} parent=23 // pred_fallthru
          _
        %s135 = sand.u32 %s37, 1
        %s136 = scalar_lea.sflag [#allocation3], %s135
        %s137 = sand.u32 %s37, 1
        %s138 = smul.addr %s137, 8
        %s139 = scalar_lea.vmem [#allocation2], %s138
        %p140 = pneg %p50
        %p141 = pneg %p47
        %p142 = pneg %p78
        %p143 = pneg %p75
        %s144 = sand.u32 %s65, 1
        %s145 = sand.u32 %s65, 1
        %s146 = smul.addr %s145, 32
        %s147 = scalar_lea.vmem [#allocation4], %s146
        %v148 = vld [vmem:[%s129] sm:$0xff]
        %v149 = vlaneseq
        %v150 = vshrl.u32 %v149, 7
        %v151 = vadd.s32 %v150, 8
        %v152 = vlaneseq
        %v153 = vand.u32 %v152, 127
        %vm154 = vcmp.lt.s32.totalorder %v153, 8
        %v155 = vmul.u32 %v153, 2
        %v156 = vsub.s32 %v153, 8
        %v157 = vmul.u32 %v156, 2
        %v158 = vadd.s32 %v157, 1
        %v159 = vsel %vm154, %v155, %v158
        %vm160 = vcmp.eq.s32.totalorder %v150, %v159
        %vm161 = vcmp.eq.s32.totalorder %v151, %v159
        %v162 = vsel %vm160, 1.0, 0.0
        %v163 = vsel %vm161, 1.0, 0.0
        %vm164 = vcmask 130048
        %v166 = vsel %vm164, %v148, 0
        %168 = vmatpush.msra.mxu0 0.0
        %169 = vmatpush.msra.mxu0 0.0
        %170 = vmatpush.msra.mxu0 0.0
        %171 = vmatpush.msra.mxu0 0.0
        %172 = vmatpush.msra.mxu0 0.0
        %173 = vmatpush.msra.mxu0 0.0
        %174 = vmatpush.msra.mxu0 0.0
        %175 = vmatpush.msra.mxu0 0.0
        %176 = vmatpush.msra.mxu0 0.0
        %177 = vmatpush.msra.mxu0 0.0
        %178 = vmatpush.msra.mxu0 0.0
        %179 = vmatpush.msra.mxu0 0.0
        %180 = vmatpush.msra.mxu0 0.0
        %181 = vmatpush.msra.mxu0 0.0
        %182 = vmatpush.msra.mxu0 %v163
        %183 = vmatpush.msra.mxu0 %v162
        %184 = vmatmul.f32.gmra.mxu0 %v166
        %v185 = vpop.f32.mrf.mxu0
        %v186 = vadd.f32 0.0, %v185
        %187 = vdwg.mxu0
        %188 = vrot.lane.b32.xlu0 %v148, 112
        %v189 = vpop.permute.xlu0 %188
        %v190 = vsel %vm164, %v189, 0
        %192 = vmatpush.msra.mxu0 0.0
        %193 = vmatpush.msra.mxu0 0.0
        %194 = vmatpush.msra.mxu0 0.0
        %195 = vmatpush.msra.mxu0 0.0
        %196 = vmatpush.msra.mxu0 0.0
        %197 = vmatpush.msra.mxu0 0.0
        %198 = vmatpush.msra.mxu0 0.0
        %199 = vmatpush.msra.mxu0 0.0
        %200 = vmatpush.msra.mxu0 0.0
        %201 = vmatpush.msra.mxu0 0.0
        %202 = vmatpush.msra.mxu0 0.0
        %203 = vmatpush.msra.mxu0 0.0
        %204 = vmatpush.msra.mxu0 0.0
        %205 = vmatpush.msra.mxu0 0.0
        %206 = vmatpush.msra.mxu0 %v163
        %207 = vmatpush.msra.mxu0 %v162
        %208 = vmatmul.f32.gmra.mxu0 %v190
        %v209 = vpop.f32.mrf.mxu0
        %v210 = vadd.f32 0.0, %v209
        %211 = vdwg.mxu0
        %vm212 = vcmask 64512
        %213 = vst.msk [vmem:[%s147] sm:$0xff] %vm212, %v186
        %s214 = scalar_lea.vmem %s147, 8 [#allocation4]
        %215 = vst.msk [vmem:[%s214] sm:$0xff] %vm212, %v210
        %217 = vrot.lane.b32.xlu0 %v186, 120
        %v218 = vpop.permute.xlu0 %217
        %s220 = scalar_lea.vmem %s147, 16 [#allocation4]
        %221 = vst.msk [vmem:[%s220] sm:$0xff] %vm212, %v218
        %223 = vrot.lane.b32.xlu0 %v210, 120
        %v224 = vpop.permute.xlu0 %223
        %s226 = scalar_lea.vmem %s147, 24 [#allocation4]
        %227 = vst.msk [vmem:[%s226] sm:$0xff] %vm212, %v224
        %s228 = sand.u32 %s65, 1
        %s229 = sand.u32 %s65, 1
        %s230 = smul.addr %s229, 32
        %s231 = scalar_lea.vmem [#allocation4], %s230
        // Predicated region
        $region29: #{tpu_custom_call.1} parent=23 // pred_check
          %p232 = pneg %p75
        $region30: #{tpu_custom_call.1} parent=23 // pred_check_branch
          %234 = sbr.rel (%p232) target = $region32
        $region31: #{tpu_custom_call.1} parent=23 // pred_region
          %s235 = smul.addr %s19, 16
          %s236 = sadd.s32 %s20, %s235
          %s237 = smul.addr %s236, 8
          %s238 = scalar_lea.vmem %s1, %s237
          // Predicated region
          $region33: #{tpu_custom_call.1} parent=31 // pred_check
            _
          $region34: #{tpu_custom_call.1} parent=31 // pred_check_branch
            %240 = sbr.rel (0) target = $region36
          $region35: #{tpu_custom_call.1} parent=31 // pred_region
            // Predicated region
            $region37: #{tpu_custom_call.1} parent=35 // pred_check
              _
            $region38: #{tpu_custom_call.1} parent=35 // pred_check_branch
              %242 = sbr.rel (0) target = $region40
            $region39: #{tpu_custom_call.1} parent=35 // pred_region
              // Predicated region
              $region52: #{tpu_custom_call.1} parent=39 // pred_check
                _
              $region53: #{tpu_custom_call.1} parent=39 // pred_check_branch
                %264 = sbr.rel (0) target = $region55
              $region54: #{tpu_custom_call.1} parent=39 // pred_region
                loop: start=0, step=1, limit=1
                $region56: #{tpu_custom_call.1} parent=54 // loop_pre_header
                  _
                $region57: #{tpu_custom_call.1} parent=54 // loop_header
                  %s266 = sphi 0, %s270
                  %p267 = scmp.ge.s32.totalorder %s266, 1
                  %s271 = sphi %s231, %s231
                  %s272 = sphi %s238, %s238
                $region58: #{tpu_custom_call.1} parent=54 // loop_header_branch
                  %269 = sbr.rel (%p267) target = $region62
                $region59: #{tpu_custom_call.1} parent=54 // loop_body
                  %v273 = vld [vmem:[%s271] sm:$0xff]
                  %274 = vst [vmem:[%s272] sm:$0xff] %v273
                  %v275 = vld [vmem:[%s271 + $0x8] sm:$0xff]
                  %276 = vst [vmem:[%s272 + $0x20] sm:$0xff] %v275
                  %v277 = vld [vmem:[%s271 + $0x10] sm:$0xff]
                  %278 = vst [vmem:[%s272 + $0x40] sm:$0xff] %v277
                  %v279 = vld [vmem:[%s271 + $0x18] sm:$0xff]
                  %280 = vst [vmem:[%s272 + $0x60] sm:$0xff] %v279
                $region60: #{tpu_custom_call.1} parent=54 // loop_footer
                  %s270 = sadd.s32 1, %s266
                $region61: #{tpu_custom_call.1} parent=54 // loop_footer_branch
                  %265 = sbr.rel target = $region57
                $region62: #{tpu_custom_call.1} parent=54 // loop_exit
                  _
              $region55: #{tpu_custom_call.1} parent=39 // pred_fallthru
                _
              // Predicated region
              $region63: #{tpu_custom_call.1} parent=39 // pred_check
                _
              $region64: #{tpu_custom_call.1} parent=39 // pred_check_branch
                %282 = sbr.rel target = $region66
              $region65: #{tpu_custom_call.1} parent=39 // pred_region
                _
              $region66: #{tpu_custom_call.1} parent=39 // pred_fallthru
                _
            $region40: #{tpu_custom_call.1} parent=35 // pred_fallthru
              _
            // Predicated region
            $region41: #{tpu_custom_call.1} parent=35 // pred_check
              _
            $region42: #{tpu_custom_call.1} parent=35 // pred_check_branch
              %244 = sbr.rel target = $region44
            $region43: #{tpu_custom_call.1} parent=35 // pred_region
              %s246 = ssub.s32 256, 1
              loop: start=0, step=1, limit=1
              $region45: #{tpu_custom_call.1} parent=43 // loop_pre_header
                _
              $region46: #{tpu_custom_call.1} parent=43 // loop_header
                %s248 = sphi 0, %s252
                %p249 = scmp.ge.s32.totalorder %s248, 1
                %s253 = sphi %s231, %s231
                %s254 = sphi %s238, %s238
              $region47: #{tpu_custom_call.1} parent=43 // loop_header_branch
                %251 = sbr.rel (%p249) target = $region51
              $region48: #{tpu_custom_call.1} parent=43 // loop_body
                %v255 = vld [vmem:[%s253] sm:%s246]
                %256 = vst [vmem:[%s254] sm:%s246] %v255
                %v257 = vld [vmem:[%s253 + $0x8] sm:%s246]
                %258 = vst [vmem:[%s254 + $0x20] sm:%s246] %v257
                %v259 = vld [vmem:[%s253 + $0x10] sm:%s246]
                %260 = vst [vmem:[%s254 + $0x40] sm:%s246] %v259
                %v261 = vld [vmem:[%s253 + $0x18] sm:%s246]
                %262 = vst [vmem:[%s254 + $0x60] sm:%s246] %v261
              $region49: #{tpu_custom_call.1} parent=43 // loop_footer
                %s252 = sadd.s32 1, %s248
              $region50: #{tpu_custom_call.1} parent=43 // loop_footer_branch
                %247 = sbr.rel target = $region46
              $region51: #{tpu_custom_call.1} parent=43 // loop_exit
                _
            $region44: #{tpu_custom_call.1} parent=35 // pred_fallthru
              _
          $region36: #{tpu_custom_call.1} parent=31 // pred_fallthru
            _
          %283 = vnop
        $region32: #{tpu_custom_call.1} parent=23 // pred_fallthru
          _
      $region24: #{tpu_custom_call.1} parent=5 // pred_fallthru
        _
      %p284 = scmp.le.s32.totalorder 2, %s10
      // Predicated region
      $region67: #{tpu_custom_call.1} parent=5 // pred_check
        %p285 = pneg %p284
      $region68: #{tpu_custom_call.1} parent=5 // pred_check_branch
        %287 = sbr.rel (%p285) target = $region70
      $region69: #{tpu_custom_call.1} parent=5 // pred_region
        %s288 = ssub.s32 %s10, 2
        // Predicated region
        $region71: #{tpu_custom_call.1} parent=69 // pred_check
          %p289 = pneg %p81
        $region72: #{tpu_custom_call.1} parent=69 // pred_check_branch
          %291 = sbr.rel (%p289) target = $region74
        $region73: #{tpu_custom_call.1} parent=69 // pred_region
          %s292 = sand.u32 %s66, 1
          %s293 = sand.u32 %s66, 1
          %s294 = smul.addr %s293, 32
          %s295 = scalar_lea.vmem [#allocation4], %s294
        $region74: #{tpu_custom_call.1} parent=69 // pred_fallthru
          _
      $region70: #{tpu_custom_call.1} parent=5 // pred_fallthru
        _
    $region6: #{tpu_custom_call.1} parent=1 // loop_footer
      %s14 = sadd.s32 1, %s10
    $region7: #{tpu_custom_call.1} parent=1 // loop_footer_branch
      %9 = sbr.rel target = $region3
    $region8: #{tpu_custom_call.1} parent=1 // loop_exit
      _
    %296 = vsyncpa [#allocation3], 1
    %s297 = scalar_lea.sflag [#allocation3], 1
    %298 = vsyncpa %s297, 1

</llo_original>
